<compile_context>
chip_gen: v6e
topology: v6e:2x2x1
jax: 0.10.0
libtpu: 0.0.40
codegen_flags: <defaults>
</compile_context>

<pallas_src>
import functools

import jax
import jax.numpy as jnp
from jax.experimental import pallas as pl
from jax.experimental.pallas import tpu as pltpu


def _round_up(x: int, m: int) -> int:
    return (x + m - 1) // m * m


def lora_linear_kernel(x_ref, wf_ref, wa_ref, wb_ref, bfb_ref, ba_ref,
                       o_ref, acc_ref, h_ref):
    k = pl.program_id(2)

    @pl.when(k == 0)
    def _():
        acc_ref[...] = jnp.zeros_like(acc_ref)
        h_ref[...] = jnp.zeros_like(h_ref)

    x = x_ref[...]
    # frozen path: accumulate this (tm, tn) tile over K
    acc_ref[...] += jnp.dot(x, wf_ref[...], preferred_element_type=jnp.float32)
    # LoRA down-projection: accumulate (tm, r_pad) over K (r padded to 128 lanes)
    h_ref[...] += jnp.dot(x, wa_ref[...], preferred_element_type=jnp.float32)

    @pl.when(k == pl.num_programs(2) - 1)
    def _():
        # add lora_a bias once per tile, then up-project on the MXU
        h = (h_ref[...] + ba_ref[...]).astype(wb_ref.dtype)
        lora = jnp.dot(h, wb_ref[...], preferred_element_type=jnp.float32)
        # bfb already holds bf + bb (folded in the wrapper)
        o_ref[...] = (acc_ref[...] + lora + bfb_ref[...]).astype(o_ref.dtype)


@functools.partial(jax.jit, static_argnames=("tile_m", "tile_n", "tile_k",
                                             "compute_dtype"))
def lora_linear(x, wf, bf, wa, ba, wb, bb, *,
                tile_m: int = 256, tile_n: int = 512, tile_k: int = 512,
                compute_dtype=None):
    """x: (B, in). wf: (out, in), wa: (r, in), wb: (out, r) -- PyTorch layout.

    Returns (B, out) in x.dtype.
    """
    B, in_f = x.shape
    out_f = wf.shape[0]
    r = wa.shape[0]

    cdt = x.dtype if compute_dtype is None else jnp.dtype(compute_dtype)
    odt = x.dtype

    # ---- tile sizes: clamp to (8,128)-aligned covers of the real dims ----
    r_pad = _round_up(r, 128)                       # lane-dense LoRA rank
    tm = min(tile_m, _round_up(B, 8))
    tn = min(tile_n, _round_up(out_f, 128))
    tk = min(tile_k, _round_up(in_f, 128))
    M = _round_up(B, tm)
    N = _round_up(out_f, tn)
    K = _round_up(in_f, tk)

    # ---- glue: transpose to (in, out) layout, fold bb into bf, zero-pad ----
    xp = jnp.zeros((M, K), cdt).at[:B, :in_f].set(x.astype(cdt))
    wf_t = jnp.zeros((K, N), cdt).at[:in_f, :out_f].set(wf.T.astype(cdt))
    wa_t = jnp.zeros((K, r_pad), cdt).at[:in_f, :r].set(wa.T.astype(cdt))
    wb_t = jnp.zeros((r_pad, N), cdt).at[:r, :out_f].set(wb.T.astype(cdt))
    bfb = jnp.zeros((1, N), jnp.float32).at[0, :out_f].set(
        (bf + bb).astype(jnp.float32))
    ba2 = jnp.zeros((1, r_pad), jnp.float32).at[0, :r].set(ba.astype(jnp.float32))

    grid = (M // tm, N // tn, K // tk)

    # ---- explicit VMEM budget: double-buffered inputs/outputs + scratch ----
    esz = jnp.dtype(cdt).itemsize
    osz = jnp.dtype(odt).itemsize
    io_bytes = 2 * (tm * tk * esz          # x tile
                    + tk * tn * esz        # Wf^T tile
                    + tk * r_pad * esz     # Wa^T tile
                    + r_pad * tn * esz     # Wb^T tile
                    + 8 * tn * 4           # bias tiles (sublane-padded)
                    + 8 * r_pad * 4
                    + tm * tn * osz)       # output tile
    scratch_bytes = tm * tn * 4 + tm * r_pad * 4
    vmem_limit = min(max(2 * (io_bytes + scratch_bytes) + (8 << 20), 32 << 20),
                     48 << 20)             # stay inside v7x's 64 MiB physical

    out = pl.pallas_call(
        lora_linear_kernel,
        out_shape=jax.ShapeDtypeStruct((M, N), odt),
        grid_spec=pltpu.PrefetchScalarGridSpec(
            num_scalar_prefetch=0,
            grid=grid,
            in_specs=[
                pl.BlockSpec((tm, tk), lambda i, j, k: (i, k)),      # x
                pl.BlockSpec((tk, tn), lambda i, j, k: (k, j)),      # Wf^T
                pl.BlockSpec((tk, r_pad), lambda i, j, k: (k, 0)),   # Wa^T
                pl.BlockSpec((r_pad, tn), lambda i, j, k: (0, j)),   # Wb^T (k-invariant)
                pl.BlockSpec((1, tn), lambda i, j, k: (0, j)),       # bf + bb (k-invariant)
                pl.BlockSpec((1, r_pad), lambda i, j, k: (0, 0)),    # ba (constant)
            ],
            out_specs=pl.BlockSpec((tm, tn), lambda i, j, k: (i, j)),
            scratch_shapes=[
                pltpu.VMEM((tm, tn), jnp.float32),      # frozen-path accumulator
                pltpu.VMEM((tm, r_pad), jnp.float32),   # LoRA h accumulator
            ]),
        compiler_params=pltpu.CompilerParams(
            dimension_semantics=("parallel", "parallel", "arbitrary"),
            vmem_limit_bytes=int(vmem_limit)),
    )(xp, wf_t, wa_t, wb_t, bfb, ba2)

    return out[:B, :out_f]


def _reference(x, wf, bf, wa, ba, wb, bb):
    fixed = x @ wf.T + bf
    lora = (x @ wa.T + ba) @ wb.T + bb
    return lora + fixed


def _make_params(key, in_f, out_f, r, zero_b=True):
    k_wf, k_bf, k_wa, k_ba, k_wb, k_bb = jax.random.split(key, 6)
    # fixed_unit: stands in for PyTorch default Linear init
    bound = 1.0 / (in_f ** 0.5)
    wf = jax.random.uniform(k_wf, (out_f, in_f), minval=-bound, maxval=bound,
                            dtype=jnp.float32)
    bf = jax.random.uniform(k_bf, (out_f,), minval=-bound, maxval=bound,
                            dtype=jnp.float32)
    # module init: lora_a <- randn_like, lora_b <- zeros_like
    wa = jax.random.normal(k_wa, (r, in_f), dtype=jnp.float32)
    ba = jax.random.normal(k_ba, (r,), dtype=jnp.float32)
    if zero_b:
        wb = jnp.zeros((out_f, r), dtype=jnp.float32)
        bb = jnp.zeros((out_f,), dtype=jnp.float32)
    else:
        wb = jax.random.normal(k_wb, (out_f, r), dtype=jnp.float32) * 0.1
        bb = jax.random.normal(k_bb, (out_f,), dtype=jnp.float32) * 0.1
    return wf, bf, wa, ba, wb, bb


if __name__ == "__main__":
    key = jax.random.PRNGKey(0)
    k_x, k_p, k_p2, k_x2 = jax.random.split(key, 4)

    # --- small shapes matching the module defaults (latent_deg=4) ---
    B, in_f, out_f, r = 8, 32, 32, 4
    x = jax.random.normal(k_x, (B, in_f), dtype=jnp.float32)
    wf, bf, wa, ba, wb, bb = _make_params(k_p, in_f, out_f, r, zero_b=True)

    # f32 path with module init (lora_b zeros) -> matches module numerics
    out = lora_linear(x, wf, bf, wa, ba, wb, bb)
    jax.block_until_ready(out)
    ref = _reference(x, wf, bf, wa, ba, wb, bb)
    assert out.shape == (B, out_f)
    assert jnp.allclose(out, ref, atol=1e-5, rtol=1e-5), "f32 mismatch vs reference"

    # exercise the full LoRA up-projection with non-zero lora_b weights
    wf2, bf2, wa2, ba2, wb2, bb2 = _make_params(k_p, in_f, out_f, r, zero_b=False)
    out_nz = lora_linear(x, wf2, bf2, wa2, ba2, wb2, bb2)
    jax.block_until_ready(out_nz)
    ref_nz = _reference(x, wf2, bf2, wa2, ba2, wb2, bb2)
    assert jnp.allclose(out_nz, ref_nz, atol=1e-5, rtol=1e-5), "LoRA-path mismatch"

    # multi-tile grid: exercises K accumulation + N tiling + flush logic
    B2, in2, out2 = 16, 256, 256
    x2 = jax.random.normal(k_x2, (B2, in2), dtype=jnp.float32)
    wfL, bfL, waL, baL, wbL, bbL = _make_params(k_p2, in2, out2, r, zero_b=False)
    out_big = lora_linear(x2, wfL, bfL, waL, baL, wbL, bbL,
                          tile_m=8, tile_n=128, tile_k=128)
    jax.block_until_ready(out_big)
    ref_big = _reference(x2, wfL, bfL, waL, baL, wbL, bbL)
    assert jnp.allclose(out_big, ref_big, atol=1e-4, rtol=1e-4), "tiled mismatch"

    # bf16 compute path (MXU-friendly), f32 accumulation, loose tolerance
    out_bf16 = lora_linear(x, wf2, bf2, wa2, ba2, wb2, bb2,
                           compute_dtype=jnp.bfloat16)
    jax.block_until_ready(out_bf16)
    assert jnp.allclose(out_bf16, ref_nz, atol=5e-2, rtol=5e-2), "bf16 mismatch"

    print("KERNEL_OK")
</pallas_src>

<mosaic_0001>
module attributes {stable_mosaic.version = 11 : i64} {
  func.func @lora_linear_kernel(%arg0: i32, %arg1: i32, %arg2: i32, %arg3: memref<8x128xf32, #tpu.memory_space<vmem>>, %arg4: memref<128x128xf32, #tpu.memory_space<vmem>>, %arg5: memref<128x128xf32, #tpu.memory_space<vmem>>, %arg6: memref<128x128xf32, #tpu.memory_space<vmem>>, %arg7: memref<1x128xf32, #tpu.memory_space<vmem>>, %arg8: memref<1x128xf32, #tpu.memory_space<vmem>>, %arg9: memref<8x128xf32, #tpu.memory_space<vmem>>, %arg10: memref<8x128xf32, #tpu.memory_space<vmem>>, %arg11: memref<8x128xf32, #tpu.memory_space<vmem>>) attributes {dimension_semantics = [#tpu.dimension_semantics<parallel>, #tpu.dimension_semantics<parallel>, #tpu.dimension_semantics<arbitrary>], iteration_bounds = array<i64: 1, 1, 1>, scalar_prefetch = 0 : i64, scratch_operands = 2 : i64, tpu.core_type = #tpu.core_type<tc>, window_params = [{transform_indices = @transform_0, window_bounds = array<i64: 8, 128>}, {transform_indices = @transform_1, window_bounds = array<i64: 128, 128>}, {transform_indices = @transform_2, window_bounds = array<i64: 128, 128>}, {transform_indices = @transform_3, window_bounds = array<i64: 128, 128>}, {transform_indices = @transform_4, window_bounds = array<i64: 1, 128>}, {pipeline_mode = #tpu.pipeline_mode<synchronous>, transform_indices = @transform_5, window_bounds = array<i64: 1, 128>}, {transform_indices = @transform_6, window_bounds = array<i64: 8, 128>}]} {
    %c0_i32 = arith.constant 0 : i32
    %0 = arith.cmpi eq, %arg2, %c0_i32 : i32
    %1 = arith.extui %0 : i1 to i32
    %c0_i32_0 = arith.constant 0 : i32
    %2 = arith.cmpi ne, %1, %c0_i32_0 : i32
    scf.if %2 {
      %cst_17 = arith.constant 0.000000e+00 : f32
      %17 = vector.broadcast %cst_17 : f32 to vector<8x128xf32>
      %c0_18 = arith.constant 0 : index
      %c0_19 = arith.constant 0 : index
      %18 = vector.load %arg10[%c0_18, %c0_19] : memref<8x128xf32, #tpu.memory_space<vmem>>, vector<8x128xf32>
      tpu.vector_store %arg10[%c0_18, %c0_19], %17 {strides = array<i32>} : memref<8x128xf32, #tpu.memory_space<vmem>>, vector<8x128xf32>,
      %cst_20 = arith.constant 0.000000e+00 : f32
      %19 = vector.broadcast %cst_20 : f32 to vector<8x128xf32>
      %c0_21 = arith.constant 0 : index
      %c0_22 = arith.constant 0 : index
      %20 = vector.load %arg11[%c0_21, %c0_22] : memref<8x128xf32, #tpu.memory_space<vmem>>, vector<8x128xf32>
      tpu.vector_store %arg11[%c0_21, %c0_22], %19 {strides = array<i32>} : memref<8x128xf32, #tpu.memory_space<vmem>>, vector<8x128xf32>,
    } else {
    }
    %c0 = arith.constant 0 : index
    %c0_1 = arith.constant 0 : index
    %3 = vector.load %arg3[%c0, %c0_1] : memref<8x128xf32, #tpu.memory_space<vmem>>, vector<8x128xf32>
    %c0_2 = arith.constant 0 : index
    %c0_3 = arith.constant 0 : index
    %4 = vector.load %arg10[%c0_2, %c0_3] : memref<8x128xf32, #tpu.memory_space<vmem>>, vector<8x128xf32>
    %c0_4 = arith.constant 0 : index
    %c0_5 = arith.constant 0 : index
    %5 = vector.load %arg4[%c0_4, %c0_5] : memref<128x128xf32, #tpu.memory_space<vmem>>, vector<128x128xf32>
    %cst = arith.constant dense<0.000000e+00> : vector<8x128xf32>
    %6 = tpu.matmul %3, %5, %cst {dimension_numbers = #tpu.dot_dimension_numbers<[1], [0], [0], [1], [0, 0, 1, 1], [], []>} : vector<8x128xf32>, vector<128x128xf32>, vector<8x128xf32> -> vector<8x128xf32>
    %7 = arith.addf %4, %6 : vector<8x128xf32>
    %c0_6 = arith.constant 0 : index
    %c0_7 = arith.constant 0 : index
    %8 = vector.load %arg10[%c0_6, %c0_7] : memref<8x128xf32, #tpu.memory_space<vmem>>, vector<8x128xf32>
    tpu.vector_store %arg10[%c0_6, %c0_7], %7 {strides = array<i32>} : memref<8x128xf32, #tpu.memory_space<vmem>>, vector<8x128xf32>,
    %c0_8 = arith.constant 0 : index
    %c0_9 = arith.constant 0 : index
    %9 = vector.load %arg11[%c0_8, %c0_9] : memref<8x128xf32, #tpu.memory_space<vmem>>, vector<8x128xf32>
    %c0_10 = arith.constant 0 : index
    %c0_11 = arith.constant 0 : index
    %10 = vector.load %arg5[%c0_10, %c0_11] : memref<128x128xf32, #tpu.memory_space<vmem>>, vector<128x128xf32>
    %cst_12 = arith.constant dense<0.000000e+00> : vector<8x128xf32>
    %11 = tpu.matmul %3, %10, %cst_12 {dimension_numbers = #tpu.dot_dimension_numbers<[1], [0], [0], [1], [0, 0, 1, 1], [], []>} : vector<8x128xf32>, vector<128x128xf32>, vector<8x128xf32> -> vector<8x128xf32>
    %12 = arith.addf %9, %11 : vector<8x128xf32>
    %c0_13 = arith.constant 0 : index
    %c0_14 = arith.constant 0 : index
    %13 = vector.load %arg11[%c0_13, %c0_14] : memref<8x128xf32, #tpu.memory_space<vmem>>, vector<8x128xf32>
    tpu.vector_store %arg11[%c0_13, %c0_14], %12 {strides = array<i32>} : memref<8x128xf32, #tpu.memory_space<vmem>>, vector<8x128xf32>,
    %c0_i32_15 = arith.constant 0 : i32
    %14 = arith.cmpi eq, %arg2, %c0_i32_15 : i32
    %15 = arith.extui %14 : i1 to i32
    %c0_i32_16 = arith.constant 0 : i32
    %16 = arith.cmpi ne, %15, %c0_i32_16 : i32
    scf.if %16 {
      %c0_17 = arith.constant 0 : index
      %c0_18 = arith.constant 0 : index
      %17 = vector.load %arg11[%c0_17, %c0_18] : memref<8x128xf32, #tpu.memory_space<vmem>>, vector<8x128xf32>
      %c0_19 = arith.constant 0 : index
      %c0_20 = arith.constant 0 : index
      %18 = vector.load %arg8[%c0_19, %c0_20] : memref<1x128xf32, #tpu.memory_space<vmem>>, vector<1x128xf32>
      %19 = vector.broadcast %18 : vector<1x128xf32> to vector<8x128xf32>
      %20 = arith.addf %17, %19 : vector<8x128xf32>
      %c0_21 = arith.constant 0 : index
      %c0_22 = arith.constant 0 : index
      %21 = vector.load %arg6[%c0_21, %c0_22] : memref<128x128xf32, #tpu.memory_space<vmem>>, vector<128x128xf32>
      %cst_23 = arith.constant dense<0.000000e+00> : vector<8x128xf32>
      %22 = tpu.matmul %20, %21, %cst_23 {dimension_numbers = #tpu.dot_dimension_numbers<[1], [0], [0], [1], [0, 0, 1, 1], [], []>} : vector<8x128xf32>, vector<128x128xf32>, vector<8x128xf32> -> vector<8x128xf32>
      %c0_24 = arith.constant 0 : index
      %c0_25 = arith.constant 0 : index
      %23 = vector.load %arg10[%c0_24, %c0_25] : memref<8x128xf32, #tpu.memory_space<vmem>>, vector<8x128xf32>
      %24 = arith.addf %23, %22 : vector<8x128xf32>
      %c0_26 = arith.constant 0 : index
      %c0_27 = arith.constant 0 : index
      %25 = vector.load %arg7[%c0_26, %c0_27] : memref<1x128xf32, #tpu.memory_space<vmem>>, vector<1x128xf32>
      %26 = vector.broadcast %25 : vector<1x128xf32> to vector<8x128xf32>
      %27 = arith.addf %24, %26 : vector<8x128xf32>
      %c0_28 = arith.constant 0 : index
      %c0_29 = arith.constant 0 : index
      %28 = vector.load %arg9[%c0_28, %c0_29] : memref<8x128xf32, #tpu.memory_space<vmem>>, vector<8x128xf32>
      tpu.vector_store %arg9[%c0_28, %c0_29], %27 {strides = array<i32>} : memref<8x128xf32, #tpu.memory_space<vmem>>, vector<8x128xf32>,
    } else {
    }
    return
  }
  func.func @transform_0(%arg0: i32, %arg1: i32, %arg2: i32) -> (i32, i32) {
    %c0_i32 = arith.constant 0 : i32
    return %arg0, %arg2 : i32, i32
  }
  func.func @transform_1(%arg0: i32, %arg1: i32, %arg2: i32) -> (i32, i32) {
    %c0_i32 = arith.constant 0 : i32
    return %arg2, %arg1 : i32, i32
  }
  func.func @transform_2(%arg0: i32, %arg1: i32, %arg2: i32) -> (i32, i32) {
    %c0_i32 = arith.constant 0 : i32
    %c0_i32_0 = arith.constant 0 : i32
    return %arg2, %c0_i32 : i32, i32
  }
  func.func @transform_3(%arg0: i32, %arg1: i32, %arg2: i32) -> (i32, i32) {
    %c0_i32 = arith.constant 0 : i32
    %c0_i32_0 = arith.constant 0 : i32
    return %c0_i32, %arg1 : i32, i32
  }
  func.func @transform_4(%arg0: i32, %arg1: i32, %arg2: i32) -> (i32, i32) {
    %c0_i32 = arith.constant 0 : i32
    %c0_i32_0 = arith.constant 0 : i32
    return %c0_i32, %arg1 : i32, i32
  }
  func.func @transform_5(%arg0: i32, %arg1: i32, %arg2: i32) -> (i32, i32) {
    %c0_i32 = arith.constant 0 : i32
    %c0_i32_0 = arith.constant 0 : i32
    %c0_i32_1 = arith.constant 0 : i32
    return %c0_i32, %c0_i32_0 : i32, i32
  }
  func.func @transform_6(%arg0: i32, %arg1: i32, %arg2: i32) -> (i32, i32) {
    %c0_i32 = arith.constant 0 : i32
    return %arg0, %arg1 : i32, i32
  }
}

</mosaic_0001>

<llo_original>
// kernel: lora_linear.1
$region0: #{lora_linear.1}
  #allocation0 [shape = 'u32[]', space=smem, size = 0x4, offset = 0x4, fixed_abs, tag = 'smem constant byte address 0x4 - core index']
  #allocation1 [shape = 'u32[144,128]{1,0:T(1,128)}', space=vmem, size = 0x12000, scoped, tag = 'internal scratch']
  #allocation2 [shape = 'f32[8,128]{1,0:T(8,128)}', space=vmem, size = 0x1000, scoped, tag = 'scratch operand']
  #allocation3 [shape = 'f32[8,128]{1,0:T(8,128)}', space=vmem, size = 0x1000, scoped, tag = 'scratch operand']
  %s0 = inlined_call_operand.vmem [shape: f32[8,128], index: 0, kind: input, shape index: {}]
  %s1 = inlined_call_operand.vmem [shape: f32[128,128], index: 1, kind: input, shape index: {}]
  %s2 = inlined_call_operand.vmem [shape: f32[128,128], index: 2, kind: input, shape index: {}]
  %s3 = inlined_call_operand.vmem [shape: f32[128,128], index: 3, kind: input, shape index: {}]
  %s4 = inlined_call_operand.vmem [shape: f32[1,128], index: 4, kind: input, shape index: {}]
  %s5 = inlined_call_operand.vmem [shape: f32[1,128], index: 5, kind: input, shape index: {}]
  %s6 = inlined_call_operand.hbm [shape: f32[8,128], index: 6, kind: output, shape index: {}]
  %s7 = sld [smem:[#allocation0]]
  $region42: #{lora_linear.1} parent=0
    _
  %s9 = ssub.s32 1, %s7
  %s10 = scalar_select 0, %s9, %s7
  $region1: #{lora_linear.1} parent=0
    #allocation4 [shape = 'u8[4096]{0}', space=vmem, size = 0x1000, scoped, tag = 'output window, operand 0, single buffered']
    #allocation5 [shape = 's32[1]{0}', space=sflag, size = 0x4, scoped, tag = 'scoped memory for lora_linear.1']
    %11 = vsyncpa [#allocation5], 0
    // Predicated region
    $region2: #{lora_linear.1} parent=1 // pred_check
      _
    $region3: #{lora_linear.1} parent=1 // pred_check_branch
      %13 = sbr.rel (0) target = $region5
    $region4: #{lora_linear.1} parent=1 // pred_region
      _
    $region5: #{lora_linear.1} parent=1 // pred_fallthru
      _
    // Predicated region
    $region6: #{lora_linear.1} parent=1 // pred_check
      _
    $region7: #{lora_linear.1} parent=1 // pred_check_branch
      %15 = sbr.rel (0) target = $region9
    $region8: #{lora_linear.1} parent=1 // pred_region
      _
    $region9: #{lora_linear.1} parent=1 // pred_fallthru
      _
    // Predicated region
    $region10: #{lora_linear.1} parent=1 // pred_check
      _
    $region11: #{lora_linear.1} parent=1 // pred_check_branch
      %17 = sbr.rel (0) target = $region13
    $region12: #{lora_linear.1} parent=1 // pred_region
      _
    $region13: #{lora_linear.1} parent=1 // pred_fallthru
      _
    // Predicated region
    $region14: #{lora_linear.1} parent=1 // pred_check
      _
    $region15: #{lora_linear.1} parent=1 // pred_check_branch
      %19 = sbr.rel (0) target = $region17
    $region16: #{lora_linear.1} parent=1 // pred_region
      _
    $region17: #{lora_linear.1} parent=1 // pred_fallthru
      _
    // Predicated region
    $region18: #{lora_linear.1} parent=1 // pred_check
      _
    $region19: #{lora_linear.1} parent=1 // pred_check_branch
      %21 = sbr.rel (0) target = $region21
    $region20: #{lora_linear.1} parent=1 // pred_region
      _
    $region21: #{lora_linear.1} parent=1 // pred_fallthru
      _
    // Predicated region
    $region22: #{lora_linear.1} parent=1 // pred_check
      _
    $region23: #{lora_linear.1} parent=1 // pred_check_branch
      %23 = sbr.rel (0) target = $region25
    $region24: #{lora_linear.1} parent=1 // pred_region
      _
    $region25: #{lora_linear.1} parent=1 // pred_fallthru
      _
    %p24 = scmp.eq.s32.totalorder 0, 0
    // Predicated region
    $region26: #{lora_linear.1} parent=1 // pred_check
      %p25 = pneg %p24
    $region27: #{lora_linear.1} parent=1 // pred_check_branch
      %27 = sbr.rel (%p25) target = $region29
    $region28: #{lora_linear.1} parent=1 // pred_region
      %28 = vst [vmem:[#allocation2] sm:$0xff] 0.0
      %29 = vst [vmem:[#allocation3] sm:$0xff] 0.0
    $region29: #{lora_linear.1} parent=1 // pred_fallthru
      _
    %v30 = vld [vmem:[%s0] sm:$0xff]
    %v31 = vld [vmem:[#allocation2] sm:$0xff]
    %v32 = vld [vmem:[%s1] sm:$0xff]
    %v33 = vld [vmem:[%s1 + $0x8] sm:$0xff]
    %v34 = vld [vmem:[%s1 + $0x10] sm:$0xff]
    %v35 = vld [vmem:[%s1 + $0x18] sm:$0xff]
    %v36 = vld [vmem:[%s1 + $0x20] sm:$0xff]
    %v37 = vld [vmem:[%s1 + $0x28] sm:$0xff]
    %v38 = vld [vmem:[%s1 + $0x30] sm:$0xff]
    %v39 = vld [vmem:[%s1 + $0x38] sm:$0xff]
    %v40 = vld [vmem:[%s1 + $0x40] sm:$0xff]
    %v41 = vld [vmem:[%s1 + $0x48] sm:$0xff]
    %v42 = vld [vmem:[%s1 + $0x50] sm:$0xff]
    %v43 = vld [vmem:[%s1 + $0x58] sm:$0xff]
    %v44 = vld [vmem:[%s1 + $0x60] sm:$0xff]
    %v45 = vld [vmem:[%s1 + $0x68] sm:$0xff]
    %v46 = vld [vmem:[%s1 + $0x70] sm:$0xff]
    %v47 = vld [vmem:[%s1 + $0x78] sm:$0xff]
    %48 = vmatprep.subr.mxu0 0.0
    %49 = vmatpush1.msra.mxu0 %v47
    %50 = vmatprep.subr.mxu0 0.0
    %51 = vmatpush1.msra.mxu0 %v46
    %52 = vmatprep.subr.mxu0 0.0
    %53 = vmatpush1.msra.mxu0 %v45
    %54 = vmatprep.subr.mxu0 0.0
    %55 = vmatpush1.msra.mxu0 %v44
    %56 = vmatprep.subr.mxu0 0.0
    %57 = vmatpush1.msra.mxu0 %v43
    %58 = vmatprep.subr.mxu0 0.0
    %59 = vmatpush1.msra.mxu0 %v42
    %60 = vmatprep.subr.mxu0 0.0
    %61 = vmatpush1.msra.mxu0 %v41
    %62 = vmatprep.subr.mxu0 0.0
    %63 = vmatpush1.msra.mxu0 %v40
    %64 = vmatprep.subr.mxu0 0.0
    %65 = vmatpush1.msra.mxu0 %v39
    %66 = vmatprep.subr.mxu0 0.0
    %67 = vmatpush1.msra.mxu0 %v38
    %68 = vmatprep.subr.mxu0 0.0
    %69 = vmatpush1.msra.mxu0 %v37
    %70 = vmatprep.subr.mxu0 0.0
    %71 = vmatpush1.msra.mxu0 %v36
    %72 = vmatprep.subr.mxu0 0.0
    %73 = vmatpush1.msra.mxu0 %v35
    %74 = vmatprep.subr.mxu0 0.0
    %75 = vmatpush1.msra.mxu0 %v34
    %76 = vmatprep.subr.mxu0 0.0
    %77 = vmatpush1.msra.mxu0 %v33
    %78 = vmatprep.subr.mxu0 0.0
    %79 = vmatpush1.msra.mxu0 %v32
    %80 = vmatprep.subr.mxu0 0.0
    %81 = vmatpush2.msra.mxu0 0.0
    %82 = vmatprep.subr.mxu0 0.0
    %83 = vmatpush2.msra.mxu0 0.0
    %84 = vmatprep.subr.mxu0 0.0
    %85 = vmatpush2.msra.mxu0 0.0
    %86 = vmatprep.subr.mxu0 0.0
    %87 = vmatpush2.msra.mxu0 0.0
    %88 = vmatprep.subr.mxu0 0.0
    %89 = vmatpush2.msra.mxu0 0.0
    %90 = vmatprep.subr.mxu0 0.0
    %91 = vmatpush2.msra.mxu0 0.0
    %92 = vmatprep.subr.mxu0 0.0
    %93 = vmatpush2.msra.mxu0 0.0
    %94 = vmatprep.subr.mxu0 0.0
    %95 = vmatpush2.msra.mxu0 0.0
    %96 = vmatprep.subr.mxu0 0.0
    %97 = vmatpush2.msra.mxu0 0.0
    %98 = vmatprep.subr.mxu0 0.0
    %99 = vmatpush2.msra.mxu0 0.0
    %100 = vmatprep.subr.mxu0 0.0
    %101 = vmatpush2.msra.mxu0 0.0
    %102 = vmatprep.subr.mxu0 0.0
    %103 = vmatpush2.msra.mxu0 0.0
    %104 = vmatprep.subr.mxu0 0.0
    %105 = vmatpush2.msra.mxu0 0.0
    %106 = vmatprep.subr.mxu0 0.0
    %107 = vmatpush2.msra.mxu0 0.0
    %108 = vmatprep.subr.mxu0 0.0
    %109 = vmatpush2.msra.mxu0 0.0
    %110 = vmatprep.subr.mxu0 0.0
    %111 = vmatpush2.msra.mxu0 0.0
    %112 = vmatprep.mubr.f32.mxu0 0.0
    %113 = vmatmul.mubr.f32.gmra.mxu0 %v30
    %v114 = vpop.f32.mrf.mxu0
    %v115 = vadd.f32 0.0, %v114
    %v116 = vpop.f32.mrf.mxu0
    %117 = vdwg.mxu0
    %v118 = vadd.f32 %v31, %v115
    %119 = vst [vmem:[#allocation2] sm:$0xff] %v118
    %v120 = vld [vmem:[#allocation3] sm:$0xff]
    %v121 = vld [vmem:[%s2] sm:$0xff]
    %v122 = vld [vmem:[%s2 + $0x8] sm:$0xff]
    %v123 = vld [vmem:[%s2 + $0x10] sm:$0xff]
    %v124 = vld [vmem:[%s2 + $0x18] sm:$0xff]
    %v125 = vld [vmem:[%s2 + $0x20] sm:$0xff]
    %v126 = vld [vmem:[%s2 + $0x28] sm:$0xff]
    %v127 = vld [vmem:[%s2 + $0x30] sm:$0xff]
    %v128 = vld [vmem:[%s2 + $0x38] sm:$0xff]
    %v129 = vld [vmem:[%s2 + $0x40] sm:$0xff]
    %v130 = vld [vmem:[%s2 + $0x48] sm:$0xff]
    %v131 = vld [vmem:[%s2 + $0x50] sm:$0xff]
    %v132 = vld [vmem:[%s2 + $0x58] sm:$0xff]
    %v133 = vld [vmem:[%s2 + $0x60] sm:$0xff]
    %v134 = vld [vmem:[%s2 + $0x68] sm:$0xff]
    %v135 = vld [vmem:[%s2 + $0x70] sm:$0xff]
    %v136 = vld [vmem:[%s2 + $0x78] sm:$0xff]
    %137 = vmatprep.subr.mxu0 0.0
    %138 = vmatpush1.msra.mxu0 %v136
    %139 = vmatprep.subr.mxu0 0.0
    %140 = vmatpush1.msra.mxu0 %v135
    %141 = vmatprep.subr.mxu0 0.0
    %142 = vmatpush1.msra.mxu0 %v134
    %143 = vmatprep.subr.mxu0 0.0
    %144 = vmatpush1.msra.mxu0 %v133
    %145 = vmatprep.subr.mxu0 0.0
    %146 = vmatpush1.msra.mxu0 %v132
    %147 = vmatprep.subr.mxu0 0.0
    %148 = vmatpush1.msra.mxu0 %v131
    %149 = vmatprep.subr.mxu0 0.0
    %150 = vmatpush1.msra.mxu0 %v130
    %151 = vmatprep.subr.mxu0 0.0
    %152 = vmatpush1.msra.mxu0 %v129
    %153 = vmatprep.subr.mxu0 0.0
    %154 = vmatpush1.msra.mxu0 %v128
    %155 = vmatprep.subr.mxu0 0.0
    %156 = vmatpush1.msra.mxu0 %v127
    %157 = vmatprep.subr.mxu0 0.0
    %158 = vmatpush1.msra.mxu0 %v126
    %159 = vmatprep.subr.mxu0 0.0
    %160 = vmatpush1.msra.mxu0 %v125
    %161 = vmatprep.subr.mxu0 0.0
    %162 = vmatpush1.msra.mxu0 %v124
    %163 = vmatprep.subr.mxu0 0.0
    %164 = vmatpush1.msra.mxu0 %v123
    %165 = vmatprep.subr.mxu0 0.0
    %166 = vmatpush1.msra.mxu0 %v122
    %167 = vmatprep.subr.mxu0 0.0
    %168 = vmatpush1.msra.mxu0 %v121
    %169 = vmatprep.subr.mxu0 0.0
    %170 = vmatpush2.msra.mxu0 0.0
    %171 = vmatprep.subr.mxu0 0.0
    %172 = vmatpush2.msra.mxu0 0.0
    %173 = vmatprep.subr.mxu0 0.0
    %174 = vmatpush2.msra.mxu0 0.0
    %175 = vmatprep.subr.mxu0 0.0
    %176 = vmatpush2.msra.mxu0 0.0
    %177 = vmatprep.subr.mxu0 0.0
    %178 = vmatpush2.msra.mxu0 0.0
    %179 = vmatprep.subr.mxu0 0.0
    %180 = vmatpush2.msra.mxu0 0.0
    %181 = vmatprep.subr.mxu0 0.0
    %182 = vmatpush2.msra.mxu0 0.0
    %183 = vmatprep.subr.mxu0 0.0
    %184 = vmatpush2.msra.mxu0 0.0
    %185 = vmatprep.subr.mxu0 0.0
    %186 = vmatpush2.msra.mxu0 0.0
    %187 = vmatprep.subr.mxu0 0.0
    %188 = vmatpush2.msra.mxu0 0.0
    %189 = vmatprep.subr.mxu0 0.0
    %190 = vmatpush2.msra.mxu0 0.0
    %191 = vmatprep.subr.mxu0 0.0
    %192 = vmatpush2.msra.mxu0 0.0
    %193 = vmatprep.subr.mxu0 0.0
    %194 = vmatpush2.msra.mxu0 0.0
    %195 = vmatprep.subr.mxu0 0.0
    %196 = vmatpush2.msra.mxu0 0.0
    %197 = vmatprep.subr.mxu0 0.0
    %198 = vmatpush2.msra.mxu0 0.0
    %199 = vmatprep.subr.mxu0 0.0
    %200 = vmatpush2.msra.mxu0 0.0
    %201 = vmatprep.mubr.f32.mxu0 0.0
    %202 = vmatmul.mubr.f32.gmra.mxu0 %v30
    %v203 = vpop.f32.mrf.mxu0
    %v204 = vadd.f32 0.0, %v203
    %v205 = vpop.f32.mrf.mxu0
    %206 = vdwg.mxu0
    %v207 = vadd.f32 %v120, %v204
    %208 = vst [vmem:[#allocation3] sm:$0xff] %v207
    // Predicated region
    $region30: #{lora_linear.1} parent=1 // pred_check
      %p209 = pneg %p24
    $region31: #{lora_linear.1} parent=1 // pred_check_branch
      %211 = sbr.rel (%p209) target = $region33
    $region32: #{lora_linear.1} parent=1 // pred_region
      %v212 = vld [vmem:[#allocation3] sm:$0xff]
      %v213 = vld [vmem:[%s5] sm:$0x1]
      %v215 = vlaneseq
      %v216 = vshrl.u32 %v215, 7
      %v217 = vsub.s32 0, %v216
      %v218 = vrot.slane %v213, %v217
      %v220 = vadd.f32 %v212, %v218
      %v221 = vld [vmem:[%s3] sm:$0xff]
      %v222 = vld [vmem:[%s3 + $0x8] sm:$0xff]
      %v223 = vld [vmem:[%s3 + $0x10] sm:$0xff]
      %v224 = vld [vmem:[%s3 + $0x18] sm:$0xff]
      %v225 = vld [vmem:[%s3 + $0x20] sm:$0xff]
      %v226 = vld [vmem:[%s3 + $0x28] sm:$0xff]
      %v227 = vld [vmem:[%s3 + $0x30] sm:$0xff]
      %v228 = vld [vmem:[%s3 + $0x38] sm:$0xff]
      %v229 = vld [vmem:[%s3 + $0x40] sm:$0xff]
      %v230 = vld [vmem:[%s3 + $0x48] sm:$0xff]
      %v231 = vld [vmem:[%s3 + $0x50] sm:$0xff]
      %v232 = vld [vmem:[%s3 + $0x58] sm:$0xff]
      %v233 = vld [vmem:[%s3 + $0x60] sm:$0xff]
      %v234 = vld [vmem:[%s3 + $0x68] sm:$0xff]
      %v235 = vld [vmem:[%s3 + $0x70] sm:$0xff]
      %v236 = vld [vmem:[%s3 + $0x78] sm:$0xff]
      %237 = vmatprep.subr.mxu0 0.0
      %238 = vmatpush1.msra.mxu0 %v236
      %239 = vmatprep.subr.mxu0 0.0
      %240 = vmatpush1.msra.mxu0 %v235
      %241 = vmatprep.subr.mxu0 0.0
      %242 = vmatpush1.msra.mxu0 %v234
      %243 = vmatprep.subr.mxu0 0.0
      %244 = vmatpush1.msra.mxu0 %v233
      %245 = vmatprep.subr.mxu0 0.0
      %246 = vmatpush1.msra.mxu0 %v232
      %247 = vmatprep.subr.mxu0 0.0
      %248 = vmatpush1.msra.mxu0 %v231
      %249 = vmatprep.subr.mxu0 0.0
      %250 = vmatpush1.msra.mxu0 %v230
      %251 = vmatprep.subr.mxu0 0.0
      %252 = vmatpush1.msra.mxu0 %v229
      %253 = vmatprep.subr.mxu0 0.0
      %254 = vmatpush1.msra.mxu0 %v228
      %255 = vmatprep.subr.mxu0 0.0
      %256 = vmatpush1.msra.mxu0 %v227
      %257 = vmatprep.subr.mxu0 0.0
      %258 = vmatpush1.msra.mxu0 %v226
      %259 = vmatprep.subr.mxu0 0.0
      %260 = vmatpush1.msra.mxu0 %v225
      %261 = vmatprep.subr.mxu0 0.0
      %262 = vmatpush1.msra.mxu0 %v224
      %263 = vmatprep.subr.mxu0 0.0
      %264 = vmatpush1.msra.mxu0 %v223
      %265 = vmatprep.subr.mxu0 0.0
      %266 = vmatpush1.msra.mxu0 %v222
      %267 = vmatprep.subr.mxu0 0.0
      %268 = vmatpush1.msra.mxu0 %v221
      %269 = vmatprep.subr.mxu0 0.0
      %270 = vmatpush2.msra.mxu0 0.0
      %271 = vmatprep.subr.mxu0 0.0
      %272 = vmatpush2.msra.mxu0 0.0
      %273 = vmatprep.subr.mxu0 0.0
      %274 = vmatpush2.msra.mxu0 0.0
      %275 = vmatprep.subr.mxu0 0.0
      %276 = vmatpush2.msra.mxu0 0.0
      %277 = vmatprep.subr.mxu0 0.0
      %278 = vmatpush2.msra.mxu0 0.0
      %279 = vmatprep.subr.mxu0 0.0
      %280 = vmatpush2.msra.mxu0 0.0
      %281 = vmatprep.subr.mxu0 0.0
      %282 = vmatpush2.msra.mxu0 0.0
      %283 = vmatprep.subr.mxu0 0.0
      %284 = vmatpush2.msra.mxu0 0.0
      %285 = vmatprep.subr.mxu0 0.0
      %286 = vmatpush2.msra.mxu0 0.0
      %287 = vmatprep.subr.mxu0 0.0
      %288 = vmatpush2.msra.mxu0 0.0
      %289 = vmatprep.subr.mxu0 0.0
      %290 = vmatpush2.msra.mxu0 0.0
      %291 = vmatprep.subr.mxu0 0.0
      %292 = vmatpush2.msra.mxu0 0.0
      %293 = vmatprep.subr.mxu0 0.0
      %294 = vmatpush2.msra.mxu0 0.0
      %295 = vmatprep.subr.mxu0 0.0
      %296 = vmatpush2.msra.mxu0 0.0
      %297 = vmatprep.subr.mxu0 0.0
      %298 = vmatpush2.msra.mxu0 0.0
      %299 = vmatprep.subr.mxu0 0.0
      %300 = vmatpush2.msra.mxu0 0.0
      %301 = vmatprep.mubr.f32.mxu0 0.0
      %302 = vmatmul.mubr.f32.gmra.mxu0 %v220
      %v303 = vpop.f32.mrf.mxu0
      %v304 = vadd.f32 0.0, %v303
      %v305 = vpop.f32.mrf.mxu0
      %306 = vdwg.mxu0
      %v307 = vld [vmem:[#allocation2] sm:$0xff]
      %v308 = vadd.f32 %v307, %v304
      %v309 = vld [vmem:[%s4] sm:$0x1]
      %v311 = vlaneseq
      %v312 = vshrl.u32 %v311, 7
      %v313 = vsub.s32 0, %v312
      %v314 = vrot.slane %v309, %v313
      %v316 = vadd.f32 %v308, %v314
      %317 = vst [vmem:[#allocation4] sm:$0xff] %v316
    $region33: #{lora_linear.1} parent=1 // pred_fallthru
      _
    // Predicated region
    $region34: #{lora_linear.1} parent=1 // pred_check
      _
    $region35: #{lora_linear.1} parent=1 // pred_check_branch
      %319 = sbr.rel (0) target = $region37
    $region36: #{lora_linear.1} parent=1 // pred_region
      %s321 = ssub.s32 128, 128
      %322 = vsyncadd [#allocation5], %s321
      %s324 = sshll.u32 [#allocation4], 4
      %s325 = int_to_ptr.vmem [resolvable:$true] %s324
      %327 = dma.vmem_to_hbm [thread:$0]  %s325, 128, %s6, [#allocation5]
    $region37: #{lora_linear.1} parent=1 // pred_fallthru
      _
    // Predicated region
    $region38: #{lora_linear.1} parent=1 // pred_check
      _
    $region39: #{lora_linear.1} parent=1 // pred_check_branch
      %329 = sbr.rel (0) target = $region41
    $region40: #{lora_linear.1} parent=1 // pred_region
      %330 = dma.done [#allocation5], 128
    $region41: #{lora_linear.1} parent=1 // pred_fallthru
      _
    %331 = vsyncpa [#allocation5], 1

</llo_original>
